<compile_context>
chip_gen: v7x
topology: tpu7x:2x2x1
jax: 0.10.0
libtpu: 0.0.40
codegen_flags: <defaults>
</compile_context>

<pallas_src>
import jax
import jax.numpy as jnp
from jax.experimental import pallas as pl
from jax.experimental.pallas import tpu as pltpu


def _round_up(v, m):
    return ((v + m - 1) // m) * m


def _vmem_budgets():
    """Per-generation (x-tile byte budget, scoped-VMEM cap)."""
    cap = 128 << 20
    try:
        cap = int(pltpu.get_tpu_info().vmem_capacity_bytes)
    except Exception:
        pass
    if cap <= (64 << 20):             # v7x-class TensorCore (64 MiB VMEM)
        return 12 << 20, 46 << 20
    return 24 << 20, 72 << 20         # v5e / v6e (128 MiB physical VMEM)


def _make_mean_kernel(L, tL, order_embeddings):
    inv_L = 1.0 / float(L)
    n_rem = L % tL          # 0  =>  tL divides L: no masking anywhere

    def kernel(x_ref, w_ref, b_ref, out_ref, acc_ref):
        l = pl.program_id(1)
        last = pl.num_programs(1) - 1

        @pl.when(l == 0)
        def _init():
            acc_ref[...] = jnp.zeros_like(acc_ref)

        x = x_ref[...].astype(jnp.float32)                     # (tB, tL, D)

        if n_rem == 0:
            # Statically full tiles: pure sum, no per-element mask work.
            acc_ref[...] += jnp.sum(x, axis=1)
        else:
            @pl.when(l != last)
            def _sum_full():
                acc_ref[...] += jnp.sum(x, axis=1)

            @pl.when(l == last)
            def _sum_masked():
                # Mask only the remainder tile; iota kept at (1, tL, 1) and
                # broadcast by the select.
                pos = jax.lax.broadcasted_iota(jnp.int32, (1, tL, 1), 1)
                acc_ref[...] += jnp.sum(jnp.where(pos < n_rem, x, 0.0), axis=1)

        @pl.when(l == last)
        def _finalize():
            pooled = acc_ref[...] * inv_L                      # mean over L
            out = jnp.dot(pooled, w_ref[...],
                          preferred_element_type=jnp.float32)  # (tB, E_pad)
            out = out + b_ref[...]
            if order_embeddings:
                out = jnp.abs(out)
            out_ref[...] = out.astype(out_ref.dtype)

    return kernel


def _make_cls_kernel(order_embeddings):
    def kernel(x_ref, w_ref, b_ref, out_ref):
        pooled = x_ref[...].astype(jnp.float32)                # (tB, D)
        out = jnp.dot(pooled, w_ref[...],
                      preferred_element_type=jnp.float32)
        out = out + b_ref[...]
        if order_embeddings:
            out = jnp.abs(out)
        out_ref[...] = out.astype(out_ref.dtype)

    return kernel


def _mean_pallas_call(x, w_p, b_p, *, order_embeddings, tB, tL, E_pad,
                      vmem_limit, single_buffer_params):
    B, L, D = x.shape
    itemsize = int(jnp.dtype(x.dtype).itemsize)
    n_b, n_l = pl.cdiv(B, tB), pl.cdiv(L, tL)

    # W / bias have constant index_maps across the whole grid; Buffered(1)
    # keeps them single-buffered so no second D*E_pad copy eats VMEM.
    wb_kw = {"pipeline_mode": pl.Buffered(1)} if single_buffer_params else {}

    cost = pl.CostEstimate(
        flops=int(B * L * D + 2 * B * D * E_pad + B * E_pad),
        transcendentals=0,
        bytes_accessed=int(B * L * D * itemsize + D * E_pad * 4
                           + E_pad * 4 + B * E_pad * 4))

    return pl.pallas_call(
        _make_mean_kernel(L, tL, order_embeddings),
        out_shape=jax.ShapeDtypeStruct((B, E_pad), jnp.float32),
        grid=(n_b, n_l),
        in_specs=[
            # Streamed x tiles (reduction axis last in the grid).
            pl.BlockSpec((tB, tL, D), lambda b, l: (b, l, 0)),
            # W and bias resident across the whole grid.
            pl.BlockSpec((D, E_pad), lambda b, l: (0, 0), **wb_kw),
            pl.BlockSpec((1, E_pad), lambda b, l: (0, 0), **wb_kw),
        ],
        out_specs=pl.BlockSpec((tB, E_pad), lambda b, l: (b, 0)),
        scratch_shapes=[pltpu.VMEM((tB, D), jnp.float32)],
        compiler_params=pltpu.CompilerParams(
            dimension_semantics=("parallel", "arbitrary"),
            vmem_limit_bytes=vmem_limit),
        cost_estimate=cost,
    )(x, w_p, b_p)


def _cls_pallas_call(x, w_p, b_p, *, order_embeddings, tB, E_pad,
                     squeezed_slice):
    B, L, D = x.shape
    kernel = _make_cls_kernel(order_embeddings)
    out_shape = jax.ShapeDtypeStruct((B, E_pad), jnp.float32)
    params = pltpu.CompilerParams(dimension_semantics=("parallel",))
    w_spec = pl.BlockSpec((D, E_pad), lambda b: (0, 0))
    b_spec = pl.BlockSpec((1, E_pad), lambda b: (0, 0))
    out_spec = pl.BlockSpec((tB, E_pad), lambda b: (b, 0))
    grid = (pl.cdiv(B, tB),)

    if squeezed_slice:
        # Read x[:, 0, :] straight from the (B, L, D) tensor (squeezed middle
        # dim) -- no wrapper-side slice round-trip through HBM.
        return pl.pallas_call(
            kernel, out_shape=out_shape, grid=grid,
            in_specs=[pl.BlockSpec((tB, pl.Squeezed(), D),
                                   lambda b: (b, 0, 0)),
                      w_spec, b_spec],
            out_specs=out_spec, compiler_params=params,
        )(x, w_p, b_p)

    # Fallback: slice in the wrapper (extra B*D*itemsize HBM round-trip).
    return pl.pallas_call(
        kernel, out_shape=out_shape, grid=grid,
        in_specs=[pl.BlockSpec((tB, D), lambda b: (b, 0)), w_spec, b_spec],
        out_specs=out_spec, compiler_params=params,
    )(x[:, 0, :], w_p, b_p)


def encoder_text_bert_forward(x, lengths, w_map_t, b_map, *,
                              mean=True, order_embeddings=False,
                              tB=None, tL=None):
    """Pallas implementation of EncoderTextBERT.forward (pre-extracted path).

    x        : (B, L, D) f32 or bf16 pre-extracted BERT features
    lengths  : (B,) int32 -- unused on this path (kept for signature parity)
    w_map_t  : (D, E)  (transpose of PyTorch nn.Linear weight (E, D))
    b_map    : (E,)
    returns  : (out, outputs) with out (B, E) f32, outputs == x
    """
    del lengths  # not used when preextracted=True and post_transformer_layers=0
    B, L, D = x.shape
    E = w_map_t.shape[1]

    # Lane-dense output: pad E up to a multiple of 128 (zero-padded W / bias,
    # sliced back below).  Keeps the (tB, E) stores unmasked.
    E_pad = _round_up(E, 128)
    if E_pad != E:
        w_p = jnp.pad(w_map_t, ((0, 0), (0, E_pad - E)))
        b_p = jnp.pad(b_map, (0, E_pad - E))
    else:
        w_p, b_p = w_map_t, b_map
    w_p = w_p.astype(jnp.float32)
    b_p = b_p.reshape(1, E_pad).astype(jnp.float32)

    itemsize = int(jnp.dtype(x.dtype).itemsize)

    if mean:
        # Batch tile: multiple of 8 when possible (full sublanes), else full B.
        # With tB=8, B>=16 already yields >=2 B tiles for megacore sharding.
        if tB is None:
            tB = 8 if B % 8 == 0 else B

        budget, vmem_cap = _vmem_budgets()

        # Sequence tile: biggest multiple of the packed-sublane count for the
        # input dtype (8 f32 / 16 bf16 / 32 int8) inside the per-chip budget.
        sub = max(8, 32 // itemsize)
        if tL is None:
            cand = (budget // max(1, tB * D * itemsize)) // sub * sub
            cand = max(sub, cand)
            tL = L if cand >= L else cand

        x_tile_bytes = tB * tL * D * itemsize
        resident = (D * E_pad * 4 + E_pad * 4          # W + bias
                    + tB * D * 4                       # f32 accumulator
                    + 2 * tB * E_pad * 4)              # output (double-buffered)
        vmem_limit = int(min(max(2 * x_tile_bytes + 2 * resident + (4 << 20),
                                 16 << 20), vmem_cap))

        kwargs = dict(order_embeddings=order_embeddings, tB=tB, tL=tL,
                      E_pad=E_pad, vmem_limit=vmem_limit)
        try:
            out_p = _mean_pallas_call(x, w_p, b_p, single_buffer_params=True,
                                      **kwargs)
        except Exception:
            # Older Pallas without pipeline_mode / Buffered(1): double-buffer.
            out_p = _mean_pallas_call(x, w_p, b_p, single_buffer_params=False,
                                      **kwargs)
    else:
        # CLS path: large tB so the MXU sees a real M and grid-step overhead
        # is amortized.
        if tB is None:
            tB = B if B < 8 else min((B // 8) * 8, 256)
        kwargs = dict(order_embeddings=order_embeddings, tB=tB, E_pad=E_pad)
        try:
            out_p = _cls_pallas_call(x, w_p, b_p, squeezed_slice=True, **kwargs)
        except Exception:
            out_p = _cls_pallas_call(x, w_p, b_p, squeezed_slice=False,
                                     **kwargs)

    out = out_p[:, :E] if E_pad != E else out_p
    return out, x


if __name__ == "__main__":
    # Small shapes consistent with the module's forward:
    # batch B=2, seq L=8, word_dim D=32, embed_size E=64.
    B, L, D, E = 2, 8, 32, 64

    key = jax.random.PRNGKey(0)
    k_x, k_w, k_b = jax.random.split(key, 3)

    x = jax.random.normal(k_x, (B, L, D), dtype=jnp.float32)
    lengths = jnp.array([L, L - 3], dtype=jnp.int32)

    # Deterministic "nn.Linear(word_dim, embed_size)" parameters.
    w_map = jax.random.normal(k_w, (E, D), dtype=jnp.float32) * 0.02  # (E, D)
    b_map = jax.random.normal(k_b, (E,), dtype=jnp.float32) * 0.02
    w_map_t = w_map.T                                                 # (D, E)

    # --- mean=True path (default module config) ---
    out, outputs = encoder_text_bert_forward(
        x, lengths, w_map_t, b_map, mean=True, order_embeddings=False)
    out = jax.block_until_ready(out)
    outputs = jax.block_until_ready(outputs)

    ref_out = jnp.mean(x, axis=1) @ w_map.T + b_map
    assert out.shape == (B, E) and outputs.shape == (B, L, D)
    assert jnp.allclose(out, ref_out, atol=1e-5, rtol=1e-5)
    assert jnp.array_equal(outputs, x)

    # --- mean=False (CLS token) + order_embeddings path ---
    out_cls, _ = encoder_text_bert_forward(
        x, lengths, w_map_t, b_map, mean=False, order_embeddings=True)
    out_cls = jax.block_until_ready(out_cls)
    ref_cls = jnp.abs(x[:, 0, :] @ w_map.T + b_map)
    assert jnp.allclose(out_cls, ref_cls, atol=1e-5, rtol=1e-5)

    print("KERNEL_OK")
</pallas_src>

<mosaic_0001>
module attributes {stable_mosaic.version = 11 : i64} {
  func.func @kernel(%arg0: i32, %arg1: i32, %arg2: memref<2x8x32xf32, #tpu.memory_space<vmem>>, %arg3: memref<32x128xf32, #tpu.memory_space<vmem>>, %arg4: memref<1x128xf32, #tpu.memory_space<vmem>>, %arg5: memref<2x128xf32, #tpu.memory_space<vmem>>, %arg6: memref<2x32xf32, #tpu.memory_space<vmem>>) attributes {dimension_semantics = [#tpu.dimension_semantics<parallel>, #tpu.dimension_semantics<arbitrary>], iteration_bounds = array<i64: 1, 1>, scalar_prefetch = 0 : i64, scratch_operands = 1 : i64, tpu.core_type = #tpu.core_type<tc>, window_params = [{transform_indices = @transform_0, window_bounds = array<i64: 2, 8, 32>}, {pipeline_mode = #tpu.pipeline_mode<synchronous>, transform_indices = @transform_1, window_bounds = array<i64: 32, 128>}, {pipeline_mode = #tpu.pipeline_mode<synchronous>, transform_indices = @transform_2, window_bounds = array<i64: 1, 128>}, {transform_indices = @transform_3, window_bounds = array<i64: 2, 128>}]} {
    %c0_i32 = arith.constant 0 : i32
    %0 = arith.cmpi eq, %arg1, %c0_i32 : i32
    %1 = arith.extui %0 : i1 to i32
    %c0_i32_0 = arith.constant 0 : i32
    %2 = arith.cmpi ne, %1, %c0_i32_0 : i32
    scf.if %2 {
      %cst_9 = arith.constant 0.000000e+00 : f32
      %11 = vector.broadcast %cst_9 : f32 to vector<2x32xf32>
      %c0_10 = arith.constant 0 : index
      %c0_11 = arith.constant 0 : index
      %12 = vector.load %arg6[%c0_10, %c0_11] : memref<2x32xf32, #tpu.memory_space<vmem>>, vector<2x32xf32>
      tpu.vector_store %arg6[%c0_10, %c0_11], %11 {strides = array<i32>} : memref<2x32xf32, #tpu.memory_space<vmem>>, vector<2x32xf32>,
    } else {
    }
    %c0 = arith.constant 0 : index
    %c0_1 = arith.constant 0 : index
    %c0_2 = arith.constant 0 : index
    %3 = vector.load %arg2[%c0, %c0_1, %c0_2] : memref<2x8x32xf32, #tpu.memory_space<vmem>>, vector<2x8x32xf32>
    %c0_3 = arith.constant 0 : index
    %c0_4 = arith.constant 0 : index
    %4 = vector.load %arg6[%c0_3, %c0_4] : memref<2x32xf32, #tpu.memory_space<vmem>>, vector<2x32xf32>
    %cst = arith.constant dense<0.000000e+00> : vector<2x32xf32>
    %5 = vector.multi_reduction <add>, %3, %cst [1] : vector<2x8x32xf32> to vector<2x32xf32>
    %6 = arith.addf %4, %5 : vector<2x32xf32>
    %c0_5 = arith.constant 0 : index
    %c0_6 = arith.constant 0 : index
    %7 = vector.load %arg6[%c0_5, %c0_6] : memref<2x32xf32, #tpu.memory_space<vmem>>, vector<2x32xf32>
    tpu.vector_store %arg6[%c0_5, %c0_6], %6 {strides = array<i32>} : memref<2x32xf32, #tpu.memory_space<vmem>>, vector<2x32xf32>,
    %c0_i32_7 = arith.constant 0 : i32
    %8 = arith.cmpi eq, %arg1, %c0_i32_7 : i32
    %9 = arith.extui %8 : i1 to i32
    %c0_i32_8 = arith.constant 0 : i32
    %10 = arith.cmpi ne, %9, %c0_i32_8 : i32
    scf.if %10 {
      %c0_9 = arith.constant 0 : index
      %c0_10 = arith.constant 0 : index
      %11 = vector.load %arg6[%c0_9, %c0_10] : memref<2x32xf32, #tpu.memory_space<vmem>>, vector<2x32xf32>
      %cst_11 = arith.constant 1.250000e-01 : f32
      %12 = vector.broadcast %cst_11 : f32 to vector<2x32xf32>
      %13 = arith.mulf %11, %12 : vector<2x32xf32>
      %c0_12 = arith.constant 0 : index
      %c0_13 = arith.constant 0 : index
      %14 = vector.load %arg3[%c0_12, %c0_13] : memref<32x128xf32, #tpu.memory_space<vmem>>, vector<32x128xf32>
      %cst_14 = arith.constant dense<0.000000e+00> : vector<2x128xf32>
      %15 = tpu.matmul %13, %14, %cst_14 {dimension_numbers = #tpu.dot_dimension_numbers<[1], [0], [0], [1], [0, 0, 1, 1], [], []>} : vector<2x32xf32>, vector<32x128xf32>, vector<2x128xf32> -> vector<2x128xf32>
      %c0_15 = arith.constant 0 : index
      %c0_16 = arith.constant 0 : index
      %16 = vector.load %arg4[%c0_15, %c0_16] : memref<1x128xf32, #tpu.memory_space<vmem>>, vector<1x128xf32>
      %17 = vector.broadcast %16 : vector<1x128xf32> to vector<2x128xf32>
      %18 = arith.addf %15, %17 : vector<2x128xf32>
      %c0_17 = arith.constant 0 : index
      %c0_18 = arith.constant 0 : index
      %19 = vector.load %arg5[%c0_17, %c0_18] : memref<2x128xf32, #tpu.memory_space<vmem>>, vector<2x128xf32>
      tpu.vector_store %arg5[%c0_17, %c0_18], %18 {strides = array<i32>} : memref<2x128xf32, #tpu.memory_space<vmem>>, vector<2x128xf32>,
    } else {
    }
    return
  }
  func.func @transform_0(%arg0: i32, %arg1: i32) -> (i32, i32, i32) {
    %c0_i32 = arith.constant 0 : i32
    %c0_i32_0 = arith.constant 0 : i32
    return %arg0, %arg1, %c0_i32 : i32, i32, i32
  }
  func.func @transform_1(%arg0: i32, %arg1: i32) -> (i32, i32) {
    %c0_i32 = arith.constant 0 : i32
    %c0_i32_0 = arith.constant 0 : i32
    %c0_i32_1 = arith.constant 0 : i32
    return %c0_i32, %c0_i32_0 : i32, i32
  }
  func.func @transform_2(%arg0: i32, %arg1: i32) -> (i32, i32) {
    %c0_i32 = arith.constant 0 : i32
    %c0_i32_0 = arith.constant 0 : i32
    %c0_i32_1 = arith.constant 0 : i32
    return %c0_i32, %c0_i32_0 : i32, i32
  }
  func.func @transform_3(%arg0: i32, %arg1: i32) -> (i32, i32) {
    %c0_i32 = arith.constant 0 : i32
    %c0_i32_0 = arith.constant 0 : i32
    return %arg0, %c0_i32 : i32, i32
  }
}

module attributes {stable_mosaic.version = 11 : i64} {
  func.func @kernel(%arg0: i32, %arg1: i32, %arg2: memref<2x8x32xf32, #tpu.memory_space<vmem>>, %arg3: memref<32x128xf32, #tpu.memory_space<vmem>>, %arg4: memref<1x128xf32, #tpu.memory_space<vmem>>, %arg5: memref<2x128xf32, #tpu.memory_space<vmem>>, %arg6: memref<2x32xf32, #tpu.memory_space<vmem>>) attributes {dimension_semantics = [#tpu.dimension_semantics<parallel>, #tpu.dimension_semantics<arbitrary>], iteration_bounds = array<i64: 1, 1>, scalar_prefetch = 0 : i64, scratch_operands = 1 : i64, tpu.core_type = #tpu.core_type<tc>, window_params = [{transform_indices = @transform_0, window_bounds = array<i64: 2, 8, 32>}, {pipeline_mode = #tpu.pipeline_mode<synchronous>, transform_indices = @transform_1, window_bounds = array<i64: 32, 128>}, {pipeline_mode = #tpu.pipeline_mode<synchronous>, transform_indices = @transform_2, window_bounds = array<i64: 1, 128>}, {transform_indices = @transform_3, window_bounds = array<i64: 2, 128>}]} {
    %c0_i32 = arith.constant 0 : i32
    %0 = arith.cmpi eq, %arg1, %c0_i32 : i32
    %1 = arith.extui %0 : i1 to i32
    %c0_i32_0 = arith.constant 0 : i32
    %2 = arith.cmpi ne, %1, %c0_i32_0 : i32
    scf.if %2 {
      %cst_9 = arith.constant 0.000000e+00 : f32
      %11 = vector.broadcast %cst_9 : f32 to vector<2x32xf32>
      %c0_10 = arith.constant 0 : index
      %c0_11 = arith.constant 0 : index
      %12 = vector.load %arg6[%c0_10, %c0_11] : memref<2x32xf32, #tpu.memory_space<vmem>>, vector<2x32xf32>
      tpu.vector_store %arg6[%c0_10, %c0_11], %11 {strides = array<i32>} : memref<2x32xf32, #tpu.memory_space<vmem>>, vector<2x32xf32>,
    } else {
    }
    %c0 = arith.constant 0 : index
    %c0_1 = arith.constant 0 : index
    %c0_2 = arith.constant 0 : index
    %3 = vector.load %arg2[%c0, %c0_1, %c0_2] : memref<2x8x32xf32, #tpu.memory_space<vmem>>, vector<2x8x32xf32>
    %c0_3 = arith.constant 0 : index
    %c0_4 = arith.constant 0 : index
    %4 = vector.load %arg6[%c0_3, %c0_4] : memref<2x32xf32, #tpu.memory_space<vmem>>, vector<2x32xf32>
    %cst = arith.constant dense<0.000000e+00> : vector<2x32xf32>
    %5 = vector.multi_reduction <add>, %3, %cst [1] : vector<2x8x32xf32> to vector<2x32xf32>
    %6 = arith.addf %4, %5 : vector<2x32xf32>
    %c0_5 = arith.constant 0 : index
    %c0_6 = arith.constant 0 : index
    %7 = vector.load %arg6[%c0_5, %c0_6] : memref<2x32xf32, #tpu.memory_space<vmem>>, vector<2x32xf32>
    tpu.vector_store %arg6[%c0_5, %c0_6], %6 {strides = array<i32>} : memref<2x32xf32, #tpu.memory_space<vmem>>, vector<2x32xf32>,
    %c0_i32_7 = arith.constant 0 : i32
    %8 = arith.cmpi eq, %arg1, %c0_i32_7 : i32
    %9 = arith.extui %8 : i1 to i32
    %c0_i32_8 = arith.constant 0 : i32
    %10 = arith.cmpi ne, %9, %c0_i32_8 : i32
    scf.if %10 {
      %c0_9 = arith.constant 0 : index
      %c0_10 = arith.constant 0 : index
      %11 = vector.load %arg6[%c0_9, %c0_10] : memref<2x32xf32, #tpu.memory_space<vmem>>, vector<2x32xf32>
      %cst_11 = arith.constant 1.250000e-01 : f32
      %12 = vector.broadcast %cst_11 : f32 to vector<2x32xf32>
      %13 = arith.mulf %11, %12 : vector<2x32xf32>
      %c0_12 = arith.constant 0 : index
      %c0_13 = arith.constant 0 : index
      %14 = vector.load %arg3[%c0_12, %c0_13] : memref<32x128xf32, #tpu.memory_space<vmem>>, vector<32x128xf32>
      %cst_14 = arith.constant dense<0.000000e+00> : vector<2x128xf32>
      %15 = tpu.matmul %13, %14, %cst_14 {dimension_numbers = #tpu.dot_dimension_numbers<[1], [0], [0], [1], [0, 0, 1, 1], [], []>} : vector<2x32xf32>, vector<32x128xf32>, vector<2x128xf32> -> vector<2x128xf32>
      %c0_15 = arith.constant 0 : index
      %c0_16 = arith.constant 0 : index
      %16 = vector.load %arg4[%c0_15, %c0_16] : memref<1x128xf32, #tpu.memory_space<vmem>>, vector<1x128xf32>
      %17 = vector.broadcast %16 : vector<1x128xf32> to vector<2x128xf32>
      %18 = arith.addf %15, %17 : vector<2x128xf32>
      %c0_17 = arith.constant 0 : index
      %c0_18 = arith.constant 0 : index
      %19 = vector.load %arg5[%c0_17, %c0_18] : memref<2x128xf32, #tpu.memory_space<vmem>>, vector<2x128xf32>
      tpu.vector_store %arg5[%c0_17, %c0_18], %18 {strides = array<i32>} : memref<2x128xf32, #tpu.memory_space<vmem>>, vector<2x128xf32>,
    } else {
    }
    return
  }
  func.func @transform_0(%arg0: i32, %arg1: i32) -> (i32, i32, i32) {
    %c0_i32 = arith.constant 0 : i32
    %c0_i32_0 = arith.constant 0 : i32
    return %arg0, %arg1, %c0_i32 : i32, i32, i32
  }
  func.func @transform_1(%arg0: i32, %arg1: i32) -> (i32, i32) {
    %c0_i32 = arith.constant 0 : i32
    %c0_i32_0 = arith.constant 0 : i32
    %c0_i32_1 = arith.constant 0 : i32
    return %c0_i32, %c0_i32_0 : i32, i32
  }
  func.func @transform_2(%arg0: i32, %arg1: i32) -> (i32, i32) {
    %c0_i32 = arith.constant 0 : i32
    %c0_i32_0 = arith.constant 0 : i32
    %c0_i32_1 = arith.constant 0 : i32
    return %c0_i32, %c0_i32_0 : i32, i32
  }
  func.func @transform_3(%arg0: i32, %arg1: i32) -> (i32, i32) {
    %c0_i32 = arith.constant 0 : i32
    %c0_i32_0 = arith.constant 0 : i32
    return %arg0, %c0_i32 : i32, i32
  }
}

</mosaic_0001>

<llo_original>
// kernel: tpu_custom_call.1
$region0: #{tpu_custom_call.1}
  #allocation0 [shape = 'u32[]', space=smem, size = 0x4, offset = 0x4, fixed_abs, tag = 'smem constant byte address 0x4 - core index']
  #allocation1 [shape = 'u32[144,128]{1,0:T(1,128)}', space=vmem, size = 0x12000, scoped, tag = 'internal scratch']
  #allocation2 [shape = 'f32[2,32]{1,0:T(2,128)}', space=vmem, size = 0x400, scoped, tag = 'scratch operand']
  %s0 = inlined_call_operand.hbm [shape: f32[2,8,32], index: 0, kind: input, shape index: {}]
  %s1 = inlined_call_operand.hbm [shape: f32[32,128], index: 1, kind: input, shape index: {}]
  %s2 = inlined_call_operand.vmem [shape: f32[1,128], index: 2, kind: input, shape index: {}]
  %s3 = inlined_call_operand.hbm [shape: f32[2,128], index: 3, kind: output, shape index: {}]
  %s4 = sld [smem:[#allocation0]]
  $region38: #{tpu_custom_call.1} parent=0
    _
  %s6 = ssub.s32 1, %s4
  %s7 = scalar_select 0, %s6, %s4
  $region1: #{tpu_custom_call.1} parent=0
    #allocation3 [shape = 'u8[8192]{0}', space=vmem, size = 0x2000, scoped, tag = 'input window, operand 0, single buffered']
    #allocation4 [shape = 's32[1]{0}', space=sflag, size = 0x4, scoped, tag = 'scoped memory for tpu_custom_call.1']
    #allocation5 [shape = 's32[1]{0}', space=sflag, size = 0x4, scoped, tag = 'scoped memory for tpu_custom_call.1']
    #allocation6 [shape = 'u8[16384]{0}', space=vmem, size = 0x4000, scoped, tag = 'input window, operand 1, single buffered']
    #allocation7 [shape = 's32[1]{0}', space=sflag, size = 0x4, scoped, tag = 'scoped memory for tpu_custom_call.1']
    #allocation8 [shape = 'u8[1024]{0}', space=vmem, size = 0x400, scoped, tag = 'output window, operand 0, single buffered']
    %8 = vsyncpa [#allocation4], 0
    %9 = vsyncpa [#allocation7], 0
    %10 = vsyncpa [#allocation5], 0
    // Predicated region
    $region2: #{tpu_custom_call.1} parent=1 // pred_check
      _
    $region3: #{tpu_custom_call.1} parent=1 // pred_check_branch
      %12 = sbr.rel (0) target = $region5
    $region4: #{tpu_custom_call.1} parent=1 // pred_region
      %s14 = ssub.s32 256, 256
      %15 = vsyncadd [#allocation4], %s14
      %s16 = sshll.u32 [#allocation3], 4
      %s17 = int_to_ptr.vmem [resolvable:$true] %s16
      %22 = dma.hbm_to_vmem [thread:$0]  %s0, 256, %s17, [#allocation4], 128, 128, 8
    $region5: #{tpu_custom_call.1} parent=1 // pred_fallthru
      _
    // Predicated region
    $region6: #{tpu_custom_call.1} parent=1 // pred_check
      _
    $region7: #{tpu_custom_call.1} parent=1 // pred_check_branch
      %24 = sbr.rel (0) target = $region9
    $region8: #{tpu_custom_call.1} parent=1 // pred_region
      %s26 = ssub.s32 512, 512
      %27 = vsyncadd [#allocation7], %s26
      %s28 = sshll.u32 [#allocation6], 4
      %s29 = int_to_ptr.vmem [resolvable:$true] %s28
      %34 = dma.hbm_to_vmem [thread:$0]  %s1, 512, %s29, [#allocation7], 128, 128, 8
    $region9: #{tpu_custom_call.1} parent=1 // pred_fallthru
      _
    // Predicated region
    $region10: #{tpu_custom_call.1} parent=1 // pred_check
      _
    $region11: #{tpu_custom_call.1} parent=1 // pred_check_branch
      %36 = sbr.rel (0) target = $region13
    $region12: #{tpu_custom_call.1} parent=1 // pred_region
      _
    $region13: #{tpu_custom_call.1} parent=1 // pred_fallthru
      _
    // Predicated region
    $region14: #{tpu_custom_call.1} parent=1 // pred_check
      _
    $region15: #{tpu_custom_call.1} parent=1 // pred_check_branch
      %38 = sbr.rel (0) target = $region17
    $region16: #{tpu_custom_call.1} parent=1 // pred_region
      %39 = dma.done [#allocation4], 256
    $region17: #{tpu_custom_call.1} parent=1 // pred_fallthru
      _
    // Predicated region
    $region18: #{tpu_custom_call.1} parent=1 // pred_check
      _
    $region19: #{tpu_custom_call.1} parent=1 // pred_check_branch
      %41 = sbr.rel (0) target = $region21
    $region20: #{tpu_custom_call.1} parent=1 // pred_region
      %42 = dma.done [#allocation7], 512
    $region21: #{tpu_custom_call.1} parent=1 // pred_fallthru
      _
    %p43 = scmp.eq.s32.totalorder 0, 0
    // Predicated region
    $region22: #{tpu_custom_call.1} parent=1 // pred_check
      %p44 = pneg %p43
    $region23: #{tpu_custom_call.1} parent=1 // pred_check_branch
      %46 = sbr.rel (%p44) target = $region25
    $region24: #{tpu_custom_call.1} parent=1 // pred_region
      %vm47 = vcmask 254976
      %48 = vst.msk [vmem:[#allocation2] sm:$0x3] %vm47, 0.0
    $region25: #{tpu_custom_call.1} parent=1 // pred_fallthru
      _
    %v49 = vld [vmem:[#allocation3] sm:$0xff]
    %v50 = vld [vmem:[#allocation3 + $0x8] sm:$0xff]
    %v51 = vld [vmem:[#allocation2] sm:$0x3]
    %vm52 = vcmask 261120
    %v53 = vsel %vm52, %v49, 0.0
    %v54 = vrot.slane %v53, 4
    %v55 = vadd.f32 %v53, %v54
    %v56 = vrot.slane %v55, 2
    %v57 = vadd.f32 %v55, %v56
    %v58 = vrot.slane %v57, 1
    %v59 = vadd.f32 %v57, %v58
    %v60 = vsel %vm52, %v50, 0.0
    %v61 = vrot.slane %v60, 4
    %v62 = vadd.f32 %v60, %v61
    %v63 = vrot.slane %v62, 2
    %v64 = vadd.f32 %v62, %v63
    %v65 = vrot.slane %v64, 1
    %v66 = vadd.f32 %v64, %v65
    %vm69 = vcmask 1041409
    %v70 = vsel %vm69, %v66, %v59
    %v72 = vadd.f32 %v51, %v70
    %vm73 = vcmask 254976
    %74 = vst.msk [vmem:[#allocation2] sm:$0x3] %vm73, %v72
    // Predicated region
    $region26: #{tpu_custom_call.1} parent=1 // pred_check
      %p75 = pneg %p43
    $region27: #{tpu_custom_call.1} parent=1 // pred_check_branch
      %77 = sbr.rel (%p75) target = $region29
    $region28: #{tpu_custom_call.1} parent=1 // pred_region
      %v78 = vld [vmem:[#allocation2] sm:$0x3]
      %v79 = vmul.f32 %v78, 0.125
      %v80 = vld [vmem:[#allocation6] sm:$0xff]
      %v81 = vld [vmem:[#allocation6 + $0x8] sm:$0xff]
      %v82 = vld [vmem:[#allocation6 + $0x10] sm:$0xff]
      %v83 = vld [vmem:[#allocation6 + $0x18] sm:$0xff]
      %v84 = vld [vmem:[%s2] sm:$0x1]
      %v86 = vlaneseq
      %v87 = vshrl.u32 %v86, 7
      %v88 = vsub.s32 0, %v87
      %v89 = vrot.slane %v84, %v88
      %v92 = vsel %vm52, %v79, 0
      %94 = vmatprep.subr.mxu0 0.0
      %95 = vmatpush1.msra.mxu0 %v80
      %96 = vmatprep.subr.mxu0 0.0
      %97 = vmatpush1.msra.mxu0 %v81
      %98 = vmatprep.subr.mxu0 0.0
      %99 = vmatpush1.msra.mxu0 %v82
      %100 = vmatprep.subr.mxu0 0.0
      %101 = vmatpush1.msra.mxu0 %v83
      %102 = vmatprep.subr.mxu0 0.0
      %103 = vmatpush1.msra.mxu0 0.0
      %104 = vmatprep.subr.mxu0 0.0
      %105 = vmatpush1.msra.mxu0 0.0
      %106 = vmatprep.subr.mxu0 0.0
      %107 = vmatpush1.msra.mxu0 0.0
      %108 = vmatprep.subr.mxu0 0.0
      %109 = vmatpush1.msra.mxu0 0.0
      %110 = vmatprep.subr.mxu0 0.0
      %111 = vmatpush1.msra.mxu0 0.0
      %112 = vmatprep.subr.mxu0 0.0
      %113 = vmatpush1.msra.mxu0 0.0
      %114 = vmatprep.subr.mxu0 0.0
      %115 = vmatpush1.msra.mxu0 0.0
      %116 = vmatprep.subr.mxu0 0.0
      %117 = vmatpush1.msra.mxu0 0.0
      %118 = vmatprep.subr.mxu0 0.0
      %119 = vmatpush1.msra.mxu0 0.0
      %120 = vmatprep.subr.mxu0 0.0
      %121 = vmatpush1.msra.mxu0 0.0
      %122 = vmatprep.subr.mxu0 0.0
      %123 = vmatpush1.msra.mxu0 0.0
      %124 = vmatprep.subr.mxu0 0.0
      %125 = vmatpush1.msra.mxu0 0.0
      %126 = vmatprep.subr.mxu0 0.0
      %127 = vmatpush1.msra.mxu0 0.0
      %128 = vmatprep.subr.mxu0 0.0
      %129 = vmatpush1.msra.mxu0 0.0
      %130 = vmatprep.subr.mxu0 0.0
      %131 = vmatpush1.msra.mxu0 0.0
      %132 = vmatprep.subr.mxu0 0.0
      %133 = vmatpush1.msra.mxu0 0.0
      %134 = vmatprep.subr.mxu0 0.0
      %135 = vmatpush1.msra.mxu0 0.0
      %136 = vmatprep.subr.mxu0 0.0
      %137 = vmatpush1.msra.mxu0 0.0
      %138 = vmatprep.subr.mxu0 0.0
      %139 = vmatpush1.msra.mxu0 0.0
      %140 = vmatprep.subr.mxu0 0.0
      %141 = vmatpush1.msra.mxu0 0.0
      %142 = vmatprep.subr.mxu0 0.0
      %143 = vmatpush1.msra.mxu0 0.0
      %144 = vmatprep.subr.mxu0 0.0
      %145 = vmatpush1.msra.mxu0 0.0
      %146 = vmatprep.subr.mxu0 0.0
      %147 = vmatpush1.msra.mxu0 0.0
      %148 = vmatprep.subr.mxu0 0.0
      %149 = vmatpush1.msra.mxu0 0.0
      %150 = vmatprep.subr.mxu0 0.0
      %151 = vmatpush1.msra.mxu0 0.0
      %152 = vmatprep.subr.mxu0 0.0
      %153 = vmatpush1.msra.mxu0 0.0
      %154 = vmatprep.subr.mxu0 0.0
      %155 = vmatpush1.msra.mxu0 0.0
      %156 = vmatprep.subr.mxu0 0.0
      %157 = vmatpush1.msra.mxu0 0.0
      %158 = vmatprep.mubr.f32.mxu0 0.0
      %159 = vmatmul.mubr.f32.gmra.mrb[0].mxu0 %v92
      %v160 = vpop.f32.mrb[0].mxu0
      %v161 = vadd.f32 %v89, %v160
      %v162 = vpop.f32.mrb[0].mxu0
      %163 = vdwg.mxu0
      %164 = vst [vmem:[#allocation8] sm:$0x3] %v161
    $region29: #{tpu_custom_call.1} parent=1 // pred_fallthru
      _
    // Predicated region
    $region30: #{tpu_custom_call.1} parent=1 // pred_check
      _
    $region31: #{tpu_custom_call.1} parent=1 // pred_check_branch
      %166 = sbr.rel (0) target = $region33
    $region32: #{tpu_custom_call.1} parent=1 // pred_region
      %s168 = ssub.s32 32, 32
      %169 = vsyncadd [#allocation5], %s168
      %s171 = sshll.u32 [#allocation8], 4
      %s172 = int_to_ptr.vmem [resolvable:$true] %s171
      %174 = dma.vmem_to_hbm [thread:$0]  %s172, 32, %s3, [#allocation5]
    $region33: #{tpu_custom_call.1} parent=1 // pred_fallthru
      _
    // Predicated region
    $region34: #{tpu_custom_call.1} parent=1 // pred_check
      _
    $region35: #{tpu_custom_call.1} parent=1 // pred_check_branch
      %176 = sbr.rel (0) target = $region37
    $region36: #{tpu_custom_call.1} parent=1 // pred_region
      %177 = dma.done [#allocation5], 32
    $region37: #{tpu_custom_call.1} parent=1 // pred_fallthru
      _
    %178 = vsyncpa [#allocation4], 1
    %179 = vsyncpa [#allocation7], 1
    %180 = vsyncpa [#allocation5], 1

// kernel: tpu_custom_call.1
$region0: #{tpu_custom_call.1}
  #allocation0 [shape = 'u32[]', space=smem, size = 0x4, offset = 0x4, fixed_abs, tag = 'smem constant byte address 0x4 - core index']
  #allocation1 [shape = 'u32[144,128]{1,0:T(1,128)}', space=vmem, size = 0x12000, scoped, tag = 'internal scratch']
  #allocation2 [shape = 'f32[2,32]{1,0:T(2,128)}', space=vmem, size = 0x400, scoped, tag = 'scratch operand']
  %s0 = inlined_call_operand.hbm [shape: f32[2,8,32], index: 0, kind: input, shape index: {}]
  %s1 = inlined_call_operand.hbm [shape: f32[32,128], index: 1, kind: input, shape index: {}]
  %s2 = inlined_call_operand.vmem [shape: f32[1,128], index: 2, kind: input, shape index: {}]
  %s3 = inlined_call_operand.hbm [shape: f32[2,128], index: 3, kind: output, shape index: {}]
  %s4 = sld [smem:[#allocation0]]
  $region38: #{tpu_custom_call.1} parent=0
    _
  %s6 = ssub.s32 1, %s4
  %s7 = scalar_select 0, %s6, %s4
  $region1: #{tpu_custom_call.1} parent=0
    #allocation3 [shape = 'u8[8192]{0}', space=vmem, size = 0x2000, scoped, tag = 'input window, operand 0, single buffered']
    #allocation4 [shape = 's32[1]{0}', space=sflag, size = 0x4, scoped, tag = 'scoped memory for tpu_custom_call.1']
    #allocation5 [shape = 's32[1]{0}', space=sflag, size = 0x4, scoped, tag = 'scoped memory for tpu_custom_call.1']
    #allocation6 [shape = 'u8[16384]{0}', space=vmem, size = 0x4000, scoped, tag = 'input window, operand 1, single buffered']
    #allocation7 [shape = 's32[1]{0}', space=sflag, size = 0x4, scoped, tag = 'scoped memory for tpu_custom_call.1']
    #allocation8 [shape = 'u8[1024]{0}', space=vmem, size = 0x400, scoped, tag = 'output window, operand 0, single buffered']
    %8 = vsyncpa [#allocation4], 0
    %9 = vsyncpa [#allocation7], 0
    %10 = vsyncpa [#allocation5], 0
    // Predicated region
    $region2: #{tpu_custom_call.1} parent=1 // pred_check
      _
    $region3: #{tpu_custom_call.1} parent=1 // pred_check_branch
      %12 = sbr.rel (0) target = $region5
    $region4: #{tpu_custom_call.1} parent=1 // pred_region
      %s14 = ssub.s32 256, 256
      %15 = vsyncadd [#allocation4], %s14
      %s16 = sshll.u32 [#allocation3], 4
      %s17 = int_to_ptr.vmem [resolvable:$true] %s16
      %22 = dma.hbm_to_vmem [thread:$0]  %s0, 256, %s17, [#allocation4], 128, 128, 8
    $region5: #{tpu_custom_call.1} parent=1 // pred_fallthru
      _
    // Predicated region
    $region6: #{tpu_custom_call.1} parent=1 // pred_check
      _
    $region7: #{tpu_custom_call.1} parent=1 // pred_check_branch
      %24 = sbr.rel (0) target = $region9
    $region8: #{tpu_custom_call.1} parent=1 // pred_region
      %s26 = ssub.s32 512, 512
      %27 = vsyncadd [#allocation7], %s26
      %s28 = sshll.u32 [#allocation6], 4
      %s29 = int_to_ptr.vmem [resolvable:$true] %s28
      %34 = dma.hbm_to_vmem [thread:$0]  %s1, 512, %s29, [#allocation7], 128, 128, 8
    $region9: #{tpu_custom_call.1} parent=1 // pred_fallthru
      _
    // Predicated region
    $region10: #{tpu_custom_call.1} parent=1 // pred_check
      _
    $region11: #{tpu_custom_call.1} parent=1 // pred_check_branch
      %36 = sbr.rel (0) target = $region13
    $region12: #{tpu_custom_call.1} parent=1 // pred_region
      _
    $region13: #{tpu_custom_call.1} parent=1 // pred_fallthru
      _
    // Predicated region
    $region14: #{tpu_custom_call.1} parent=1 // pred_check
      _
    $region15: #{tpu_custom_call.1} parent=1 // pred_check_branch
      %38 = sbr.rel (0) target = $region17
    $region16: #{tpu_custom_call.1} parent=1 // pred_region
      %39 = dma.done [#allocation4], 256
    $region17: #{tpu_custom_call.1} parent=1 // pred_fallthru
      _
    // Predicated region
    $region18: #{tpu_custom_call.1} parent=1 // pred_check
      _
    $region19: #{tpu_custom_call.1} parent=1 // pred_check_branch
      %41 = sbr.rel (0) target = $region21
    $region20: #{tpu_custom_call.1} parent=1 // pred_region
      %42 = dma.done [#allocation7], 512
    $region21: #{tpu_custom_call.1} parent=1 // pred_fallthru
      _
    %p43 = scmp.eq.s32.totalorder 0, 0
    // Predicated region
    $region22: #{tpu_custom_call.1} parent=1 // pred_check
      %p44 = pneg %p43
    $region23: #{tpu_custom_call.1} parent=1 // pred_check_branch
      %46 = sbr.rel (%p44) target = $region25
    $region24: #{tpu_custom_call.1} parent=1 // pred_region
      %vm47 = vcmask 254976
      %48 = vst.msk [vmem:[#allocation2] sm:$0x3] %vm47, 0.0
    $region25: #{tpu_custom_call.1} parent=1 // pred_fallthru
      _
    %v49 = vld [vmem:[#allocation3] sm:$0xff]
    %v50 = vld [vmem:[#allocation3 + $0x8] sm:$0xff]
    %v51 = vld [vmem:[#allocation2] sm:$0x3]
    %vm52 = vcmask 261120
    %v53 = vsel %vm52, %v49, 0.0
    %v54 = vrot.slane %v53, 4
    %v55 = vadd.f32 %v53, %v54
    %v56 = vrot.slane %v55, 2
    %v57 = vadd.f32 %v55, %v56
    %v58 = vrot.slane %v57, 1
    %v59 = vadd.f32 %v57, %v58
    %v60 = vsel %vm52, %v50, 0.0
    %v61 = vrot.slane %v60, 4
    %v62 = vadd.f32 %v60, %v61
    %v63 = vrot.slane %v62, 2
    %v64 = vadd.f32 %v62, %v63
    %v65 = vrot.slane %v64, 1
    %v66 = vadd.f32 %v64, %v65
    %vm69 = vcmask 1041409
    %v70 = vsel %vm69, %v66, %v59
    %v72 = vadd.f32 %v51, %v70
    %vm73 = vcmask 254976
    %74 = vst.msk [vmem:[#allocation2] sm:$0x3] %vm73, %v72
    // Predicated region
    $region26: #{tpu_custom_call.1} parent=1 // pred_check
      %p75 = pneg %p43
    $region27: #{tpu_custom_call.1} parent=1 // pred_check_branch
      %77 = sbr.rel (%p75) target = $region29
    $region28: #{tpu_custom_call.1} parent=1 // pred_region
      %v78 = vld [vmem:[#allocation2] sm:$0x3]
      %v79 = vmul.f32 %v78, 0.125
      %v80 = vld [vmem:[#allocation6] sm:$0xff]
      %v81 = vld [vmem:[#allocation6 + $0x8] sm:$0xff]
      %v82 = vld [vmem:[#allocation6 + $0x10] sm:$0xff]
      %v83 = vld [vmem:[#allocation6 + $0x18] sm:$0xff]
      %v84 = vld [vmem:[%s2] sm:$0x1]
      %v86 = vlaneseq
      %v87 = vshrl.u32 %v86, 7
      %v88 = vsub.s32 0, %v87
      %v89 = vrot.slane %v84, %v88
      %v92 = vsel %vm52, %v79, 0
      %94 = vmatprep.subr.mxu0 0.0
      %95 = vmatpush1.msra.mxu0 %v80
      %96 = vmatprep.subr.mxu0 0.0
      %97 = vmatpush1.msra.mxu0 %v81
      %98 = vmatprep.subr.mxu0 0.0
      %99 = vmatpush1.msra.mxu0 %v82
      %100 = vmatprep.subr.mxu0 0.0
      %101 = vmatpush1.msra.mxu0 %v83
      %102 = vmatprep.subr.mxu0 0.0
      %103 = vmatpush1.msra.mxu0 0.0
      %104 = vmatprep.subr.mxu0 0.0
      %105 = vmatpush1.msra.mxu0 0.0
      %106 = vmatprep.subr.mxu0 0.0
      %107 = vmatpush1.msra.mxu0 0.0
      %108 = vmatprep.subr.mxu0 0.0
      %109 = vmatpush1.msra.mxu0 0.0
      %110 = vmatprep.subr.mxu0 0.0
      %111 = vmatpush1.msra.mxu0 0.0
      %112 = vmatprep.subr.mxu0 0.0
      %113 = vmatpush1.msra.mxu0 0.0
      %114 = vmatprep.subr.mxu0 0.0
      %115 = vmatpush1.msra.mxu0 0.0
      %116 = vmatprep.subr.mxu0 0.0
      %117 = vmatpush1.msra.mxu0 0.0
      %118 = vmatprep.subr.mxu0 0.0
      %119 = vmatpush1.msra.mxu0 0.0
      %120 = vmatprep.subr.mxu0 0.0
      %121 = vmatpush1.msra.mxu0 0.0
      %122 = vmatprep.subr.mxu0 0.0
      %123 = vmatpush1.msra.mxu0 0.0
      %124 = vmatprep.subr.mxu0 0.0
      %125 = vmatpush1.msra.mxu0 0.0
      %126 = vmatprep.subr.mxu0 0.0
      %127 = vmatpush1.msra.mxu0 0.0
      %128 = vmatprep.subr.mxu0 0.0
      %129 = vmatpush1.msra.mxu0 0.0
      %130 = vmatprep.subr.mxu0 0.0
      %131 = vmatpush1.msra.mxu0 0.0
      %132 = vmatprep.subr.mxu0 0.0
      %133 = vmatpush1.msra.mxu0 0.0
      %134 = vmatprep.subr.mxu0 0.0
      %135 = vmatpush1.msra.mxu0 0.0
      %136 = vmatprep.subr.mxu0 0.0
      %137 = vmatpush1.msra.mxu0 0.0
      %138 = vmatprep.subr.mxu0 0.0
      %139 = vmatpush1.msra.mxu0 0.0
      %140 = vmatprep.subr.mxu0 0.0
      %141 = vmatpush1.msra.mxu0 0.0
      %142 = vmatprep.subr.mxu0 0.0
      %143 = vmatpush1.msra.mxu0 0.0
      %144 = vmatprep.subr.mxu0 0.0
      %145 = vmatpush1.msra.mxu0 0.0
      %146 = vmatprep.subr.mxu0 0.0
      %147 = vmatpush1.msra.mxu0 0.0
      %148 = vmatprep.subr.mxu0 0.0
      %149 = vmatpush1.msra.mxu0 0.0
      %150 = vmatprep.subr.mxu0 0.0
      %151 = vmatpush1.msra.mxu0 0.0
      %152 = vmatprep.subr.mxu0 0.0
      %153 = vmatpush1.msra.mxu0 0.0
      %154 = vmatprep.subr.mxu0 0.0
      %155 = vmatpush1.msra.mxu0 0.0
      %156 = vmatprep.subr.mxu0 0.0
      %157 = vmatpush1.msra.mxu0 0.0
      %158 = vmatprep.mubr.f32.mxu0 0.0
      %159 = vmatmul.mubr.f32.gmra.mrb[0].mxu0 %v92
      %v160 = vpop.f32.mrb[0].mxu0
      %v161 = vadd.f32 %v89, %v160
      %v162 = vpop.f32.mrb[0].mxu0
      %163 = vdwg.mxu0
      %164 = vst [vmem:[#allocation8] sm:$0x3] %v161
    $region29: #{tpu_custom_call.1} parent=1 // pred_fallthru
      _
    // Predicated region
    $region30: #{tpu_custom_call.1} parent=1 // pred_check
      _
    $region31: #{tpu_custom_call.1} parent=1 // pred_check_branch
      %166 = sbr.rel (0) target = $region33
    $region32: #{tpu_custom_call.1} parent=1 // pred_region
      %s168 = ssub.s32 32, 32
      %169 = vsyncadd [#allocation5], %s168
      %s171 = sshll.u32 [#allocation8], 4
      %s172 = int_to_ptr.vmem [resolvable:$true] %s171
      %174 = dma.vmem_to_hbm [thread:$0]  %s172, 32, %s3, [#allocation5]
    $region33: #{tpu_custom_call.1} parent=1 // pred_fallthru
      _
    // Predicated region
    $region34: #{tpu_custom_call.1} parent=1 // pred_check
      _
    $region35: #{tpu_custom_call.1} parent=1 // pred_check_branch
      %176 = sbr.rel (0) target = $region37
    $region36: #{tpu_custom_call.1} parent=1 // pred_region
      %177 = dma.done [#allocation5], 32
    $region37: #{tpu_custom_call.1} parent=1 // pred_fallthru
      _
    %178 = vsyncpa [#allocation4], 1
    %179 = vsyncpa [#allocation7], 1
    %180 = vsyncpa [#allocation5], 1

</llo_original>
